<compile_context>
chip_gen: v6e
topology: v6e:2x2x1
jax: 0.10.0
libtpu: 0.0.40
codegen_flags: <defaults>
</compile_context>

<pallas_src>
import numpy as np

import jax
import jax.numpy as jnp
from jax import lax
from jax.experimental import pallas as pl
from jax.experimental.pallas import tpu as pltpu

_LANES = 128


def _round_up(x, m):
    return ((x + m - 1) // m) * m


def _sym_upper_index(n):
    """Static (n, n) int32 map into the flat upper-triangular p_hat vector
    (same ordering as torch/np triu_indices), symmetric."""
    idx = np.zeros((n, n), np.int32)
    r, c = np.triu_indices(n)
    k = np.arange(r.size, dtype=np.int32)
    idx[r, c] = k
    idx[c, r] = k
    return idx


def pack_gcn_params(X, A, W1, b1, W2, b2, W3, b3, wl, bl):
    """One-time packing of all static parameters into a single 128-lane slab.

    Row layout of the slab (every block zero-padded to 128 lanes):
      [0        : n      )  A                      (cols 0:n)
      [n_pad    : n_pad+n)  I                      (cols 0:n)
      [2*n_pad  : +n     )  X @ W1   (precomputed) (cols 0:h1)
      [w2_off   : +128   )  W2  in rows 0:h1, cols 0:h2
      [w3_off   : +128   )  W3  in rows 0:h2, cols 0:h3
      [wl1_off  : +128   )  wl.T[:h1]        cols 0:c
      [wl2_off  : +128   )  wl.T[h1:h1+h2]   cols 0:c
      [wl3_off  : +128   )  wl.T[h1+h2:]     cols 0:c
      [b_off    : +8     )  rows = b1, b2, b3, bl (then zero pad)
    """
    X = np.asarray(X, np.float32)
    A = np.asarray(A, np.float32)
    W1 = np.asarray(W1, np.float32)
    W2 = np.asarray(W2, np.float32)
    W3 = np.asarray(W3, np.float32)
    wl = np.asarray(wl, np.float32)
    b1 = np.asarray(b1, np.float32).reshape(-1)
    b2 = np.asarray(b2, np.float32).reshape(-1)
    b3 = np.asarray(b3, np.float32).reshape(-1)
    bl = np.asarray(bl, np.float32).reshape(-1)

    n, f = X.shape
    h1, h2, h3 = W1.shape[1], W2.shape[1], W3.shape[1]
    c = wl.shape[0]
    assert max(n, h1, h2, h3, c) <= _LANES, "dims must fit in 128 lanes"

    n_pad = _round_up(n, 8)
    xw1 = X @ W1                                  # hoisted off the kernel

    a_off = 0
    i_off = n_pad
    xw1_off = 2 * n_pad
    w2_off = 3 * n_pad
    w3_off = w2_off + _LANES
    wl1_off = w3_off + _LANES
    wl2_off = wl1_off + _LANES
    wl3_off = wl2_off + _LANES
    b_off = wl3_off + _LANES
    rows = b_off + 8

    pp = np.zeros((rows, _LANES), np.float32)
    pp[a_off:a_off + n, :n] = A
    pp[i_off:i_off + n, :n] = np.eye(n, dtype=np.float32)
    pp[xw1_off:xw1_off + n, :h1] = xw1
    pp[w2_off:w2_off + h1, :h2] = W2
    pp[w3_off:w3_off + h2, :h3] = W3
    wlT = wl.T                                    # (h1+h2+h3, c)
    pp[wl1_off:wl1_off + h1, :c] = wlT[:h1]
    pp[wl2_off:wl2_off + h2, :c] = wlT[h1:h1 + h2]
    pp[wl3_off:wl3_off + h3, :c] = wlT[h1 + h2:]
    pp[b_off + 0, :h1] = b1
    pp[b_off + 1, :h2] = b2
    pp[b_off + 2, :h3] = b3
    pp[b_off + 3, :c] = bl

    dims = dict(n=n, c=c, n_pad=n_pad,
                a_off=a_off, i_off=i_off, xw1_off=xw1_off,
                w2_off=w2_off, w3_off=w3_off,
                wl1_off=wl1_off, wl2_off=wl2_off, wl3_off=wl3_off,
                b_off=b_off)
    idx = _sym_upper_index(n)
    return jnp.asarray(pp), jnp.asarray(idx), dims


def _make_kernel(dims, sb):
    n = dims["n"]
    a_off, i_off, xw1_off = dims["a_off"], dims["i_off"], dims["xw1_off"]
    w2_off, w3_off = dims["w2_off"], dims["w3_off"]
    wl1_off, wl2_off, wl3_off = dims["wl1_off"], dims["wl2_off"], dims["wl3_off"]
    b_off = dims["b_off"]
    L = _LANES

    def kernel(l_ref, pp_ref, out_ref):
        f32 = jnp.float32

        # ---- static, aligned slices out of the merged slab ------------------
        a = pp_ref[a_off:a_off + n, 0:n]                  # (n, n)
        eye = pp_ref[i_off:i_off + n, 0:n]                # (n, n)  precomputed I
        xw1 = pp_ref[xw1_off:xw1_off + n, :]              # (n, 128)  X @ W1
        w2 = pp_ref[w2_off:w2_off + L, :]                 # (128, 128)
        w3 = pp_ref[w3_off:w3_off + L, :]                 # (128, 128)
        wl1 = pp_ref[wl1_off:wl1_off + L, :]              # (128, 128)
        wl2 = pp_ref[wl2_off:wl2_off + L, :]
        wl3 = pp_ref[wl3_off:wl3_off + L, :]
        b1 = pp_ref[b_off + 0:b_off + 1, :]               # (1, 128)
        b2 = pp_ref[b_off + 1:b_off + 2, :]
        b3 = pp_ref[b_off + 2:b_off + 3, :]
        bl = pp_ref[b_off + 3:b_off + 4, :]

        # ---- perturbed, normalized adjacency (batched over SB samples) ------
        logits = l_ref[...]                               # (sb, n, n)
        p = jax.nn.sigmoid(logits)
        a_pert = eye + p * a                              # I + P*A, symmetric

        deg_r = jnp.sum(a_pert, axis=2, keepdims=True)    # (sb, n, 1), >= 1
        deg_c = jnp.sum(a_pert, axis=1, keepdims=True)    # (sb, 1, n), >= 1
        a_hat = lax.rsqrt(deg_r) * a_pert * lax.rsqrt(deg_c)

        # ---- layer 1: A_hat @ (X @ W1) + b1, samples M-stacked on sublanes --
        a_hat_st = a_hat.reshape(sb * n, n)
        h1v = jnp.dot(a_hat_st, xw1, preferred_element_type=f32) + b1  # (sb*n,128)
        h1r = jnp.maximum(h1v, 0.0)

        # ---- layer 2: (A_hat @ relu(h1)) @ W2 + b2 ---------------------------
        t2 = jnp.einsum('sij,sjk->sik', a_hat, h1r.reshape(sb, n, L),
                        preferred_element_type=f32).reshape(sb * n, L)
        h2v = jnp.dot(t2, w2, preferred_element_type=f32) + b2
        h2r = jnp.maximum(h2v, 0.0)

        # ---- layer 3: (A_hat @ relu(h2)) @ W3 + b3 ---------------------------
        t3 = jnp.einsum('sij,sjk->sik', a_hat, h2r.reshape(sb, n, L),
                        preferred_element_type=f32).reshape(sb * n, L)
        h3v = jnp.dot(t3, w3, preferred_element_type=f32) + b3

        # ---- head: accumulated matmuls instead of a lane concat -------------
        out = (jnp.dot(h1v, wl1, preferred_element_type=f32)
               + jnp.dot(h2v, wl2, preferred_element_type=f32)
               + jnp.dot(h3v, wl3, preferred_element_type=f32)
               + bl)                                      # (sb*n, 128)
        out_ref[...] = out.reshape(sb, n, L)

    return kernel


def make_gcn_forward(packed, samples_per_block=None):
    """Returns a jitted fn: p_hat (S, N*(N+1)/2) or (T,)  ->  (S, N, C)."""
    pp, idx, dims = packed
    n, c = dims["n"], dims["c"]

    def fwd(p_hat):
        p_hat2 = jnp.atleast_2d(jnp.asarray(p_hat, jnp.float32))   # (s, T)
        s = p_hat2.shape[0]

        # Chunk samples: at most 2 grid steps (balances v7x's 2 TCs, collapses
        # to a single serial body on v5e/v6e), capped so VMEM stays tiny.
        if samples_per_block is None:
            sb = 1 if s == 1 else min(-(-s // 2), 32)
        else:
            sb = int(samples_per_block)
        grid = -(-s // sb)
        s_pad = grid * sb

        # Single static-index gather: (s, T) -> (s, n, n) symmetric logits.
        l_sym = jnp.take(p_hat2, idx, axis=1)
        if s_pad != s:
            l_sym = jnp.concatenate(
                [l_sym, jnp.zeros((s_pad - s, n, n), jnp.float32)], axis=0)

        out = pl.pallas_call(
            _make_kernel(dims, sb),
            out_shape=jax.ShapeDtypeStruct((s_pad, n, _LANES), jnp.float32),
            grid=(grid,),
            in_specs=[
                pl.BlockSpec((sb, n, n), lambda i: (i, 0, 0)),     # per-chunk
                pl.BlockSpec(pp.shape, lambda i: (0, 0)),          # shared slab
            ],
            out_specs=pl.BlockSpec((sb, n, _LANES), lambda i: (i, 0, 0)),
            compiler_params=pltpu.CompilerParams(
                dimension_semantics=("parallel",)),
        )(l_sym, pp)

        return out[:s, :, :c]                              # drop padding

    return jax.jit(fwd)


def _reference_forward(p_hat, X, A, W1, b1, W2, b2, W3, b3, wl, bl):
    """Plain-JAX mirror of the torch forward, for verification."""
    n = A.shape[0]
    r, c = jnp.triu_indices(n)
    s = jax.nn.sigmoid(p_hat)
    P = jnp.zeros((n, n), jnp.float32).at[r, c].set(s)
    P = P.at[c, r].set(s)
    a_pert = jnp.eye(n, dtype=jnp.float32) + P * A
    deg = jnp.sum(a_pert, axis=1)
    d_inv = jnp.where(deg > 0.0, deg ** -0.5, 0.0)
    A_hat = d_inv[:, None] * a_pert * d_inv[None, :]
    h1 = A_hat @ X @ W1 + b1
    h2 = A_hat @ jnp.maximum(h1, 0.0) @ W2 + b2
    h3 = A_hat @ jnp.maximum(h2, 0.0) @ W3 + b3
    in_lin = jnp.concatenate([h1, h2, h3], axis=1)
    return in_lin @ wl.T + bl


if __name__ == "__main__":
    key = jax.random.PRNGKey(0)
    N, F, H1, H2, H3, C = 8, 16, 32, 32, 32, 8
    S = 3                                         # perturbation samples (batch)

    ks = jax.random.split(key, 11)
    X = jax.random.normal(ks[0], (N, F), jnp.float32)
    upper = (jax.random.uniform(ks[1], (N, N)) > 0.5).astype(jnp.float32)
    A = jnp.triu(upper, 1)
    A = A + A.T                                   # symmetric, zero diagonal

    W1 = 0.1 * jax.random.normal(ks[2], (F, H1), jnp.float32)
    b1 = 0.1 * jax.random.normal(ks[3], (H1,), jnp.float32)
    W2 = 0.1 * jax.random.normal(ks[4], (H1, H2), jnp.float32)
    b2 = 0.1 * jax.random.normal(ks[5], (H2,), jnp.float32)
    W3 = 0.1 * jax.random.normal(ks[6], (H2, H3), jnp.float32)
    b3 = 0.1 * jax.random.normal(ks[7], (H3,), jnp.float32)
    wl = 0.1 * jax.random.normal(ks[8], (C, H1 + H2 + H3), jnp.float32)
    bl = 0.1 * jax.random.normal(ks[9], (C,), jnp.float32)

    # sample 0: 'ones' init (torch default); others: random logits
    T = N * (N + 1) // 2
    p_hat = jnp.concatenate(
        [jnp.ones((1, T), jnp.float32),
         0.5 * jax.random.normal(ks[10], (S - 1, T), jnp.float32)], axis=0)

    packed = pack_gcn_params(X, A, W1, b1, W2, b2, W3, b3, wl, bl)
    forward = make_gcn_forward(packed)
    out = forward(p_hat)
    out = jax.block_until_ready(out)

    assert out.shape == (S, N, C)
    for si in range(S):
        ref = _reference_forward(p_hat[si], X, A, W1, b1, W2, b2, W3, b3,
                                 wl, bl)
        assert jnp.allclose(out[si], ref, atol=1e-4, rtol=1e-4), \
            f"mismatch vs reference for sample {si}"

    print("KERNEL_OK")
</pallas_src>

<mosaic_0001>
module attributes {stable_mosaic.version = 11 : i64} {
  func.func @kernel(%arg0: i32, %arg1: memref<2x8x8xf32, #tpu.memory_space<vmem>>, %arg2: memref<672x128xf32, #tpu.memory_space<vmem>>, %arg3: memref<2x8x128xf32, #tpu.memory_space<vmem>>) attributes {dimension_semantics = [#tpu.dimension_semantics<parallel>], iteration_bounds = array<i64: 2>, scalar_prefetch = 0 : i64, scratch_operands = 0 : i64, tpu.core_type = #tpu.core_type<tc>, window_params = [{transform_indices = @transform_0, window_bounds = array<i64: 2, 8, 8>}, {pipeline_mode = #tpu.pipeline_mode<synchronous>, transform_indices = @transform_1, window_bounds = array<i64: 672, 128>}, {transform_indices = @transform_2, window_bounds = array<i64: 2, 8, 128>}]} {
    %c0 = arith.constant 0 : index
    %c0_0 = arith.constant 0 : index
    %0 = vector.load %arg2[%c0, %c0_0] : memref<672x128xf32, #tpu.memory_space<vmem>>, vector<8x8xf32>
    %c8 = arith.constant 8 : index
    %c0_1 = arith.constant 0 : index
    %1 = vector.load %arg2[%c8, %c0_1] : memref<672x128xf32, #tpu.memory_space<vmem>>, vector<8x8xf32>
    %c16 = arith.constant 16 : index
    %c0_2 = arith.constant 0 : index
    %2 = vector.load %arg2[%c16, %c0_2] : memref<672x128xf32, #tpu.memory_space<vmem>>, vector<8x128xf32>
    %c24 = arith.constant 24 : index
    %c0_3 = arith.constant 0 : index
    %3 = vector.load %arg2[%c24, %c0_3] : memref<672x128xf32, #tpu.memory_space<vmem>>, vector<128x128xf32>
    %c152 = arith.constant 152 : index
    %c0_4 = arith.constant 0 : index
    %4 = vector.load %arg2[%c152, %c0_4] : memref<672x128xf32, #tpu.memory_space<vmem>>, vector<128x128xf32>
    %c280 = arith.constant 280 : index
    %c0_5 = arith.constant 0 : index
    %5 = vector.load %arg2[%c280, %c0_5] : memref<672x128xf32, #tpu.memory_space<vmem>>, vector<128x128xf32>
    %c408 = arith.constant 408 : index
    %c0_6 = arith.constant 0 : index
    %6 = vector.load %arg2[%c408, %c0_6] : memref<672x128xf32, #tpu.memory_space<vmem>>, vector<128x128xf32>
    %c536 = arith.constant 536 : index
    %c0_7 = arith.constant 0 : index
    %7 = vector.load %arg2[%c536, %c0_7] : memref<672x128xf32, #tpu.memory_space<vmem>>, vector<128x128xf32>
    %c664 = arith.constant 664 : index
    %c0_8 = arith.constant 0 : index
    %8 = vector.load %arg2[%c664, %c0_8] : memref<672x128xf32, #tpu.memory_space<vmem>>, vector<1x128xf32>
    %c665 = arith.constant 665 : index
    %c0_9 = arith.constant 0 : index
    %9 = vector.load %arg2[%c665, %c0_9] : memref<672x128xf32, #tpu.memory_space<vmem>>, vector<1x128xf32>
    %c666 = arith.constant 666 : index
    %c0_10 = arith.constant 0 : index
    %10 = vector.load %arg2[%c666, %c0_10] : memref<672x128xf32, #tpu.memory_space<vmem>>, vector<1x128xf32>
    %c667 = arith.constant 667 : index
    %c0_11 = arith.constant 0 : index
    %11 = vector.load %arg2[%c667, %c0_11] : memref<672x128xf32, #tpu.memory_space<vmem>>, vector<1x128xf32>
    %c0_12 = arith.constant 0 : index
    %c0_13 = arith.constant 0 : index
    %c0_14 = arith.constant 0 : index
    %12 = vector.load %arg1[%c0_12, %c0_13, %c0_14] : memref<2x8x8xf32, #tpu.memory_space<vmem>>, vector<2x8x8xf32>
    %13 = arith.negf %12 : vector<2x8x8xf32>
    %14 = math.exp %13 : vector<2x8x8xf32>
    %cst = arith.constant 1.000000e+00 : f32
    %15 = vector.broadcast %cst : f32 to vector<2x8x8xf32>
    %16 = arith.addf %15, %14 : vector<2x8x8xf32>
    %17 = arith.divf %15, %16 : vector<2x8x8xf32>
    %18 = vector.shape_cast %0 : vector<8x8xf32> to vector<1x8x8xf32>
    %19 = vector.broadcast %18 : vector<1x8x8xf32> to vector<2x8x8xf32>
    %20 = arith.mulf %17, %19 : vector<2x8x8xf32>
    %21 = vector.shape_cast %1 : vector<8x8xf32> to vector<1x8x8xf32>
    %22 = vector.broadcast %21 : vector<1x8x8xf32> to vector<2x8x8xf32>
    %23 = arith.addf %22, %20 : vector<2x8x8xf32>
    %cst_15 = arith.constant dense<0.000000e+00> : vector<2x8xf32>
    %24 = vector.multi_reduction <add>, %23, %cst_15 [2] : vector<2x8x8xf32> to vector<2x8xf32>
    %25 = vector.shape_cast %24 : vector<2x8xf32> to vector<2x8x1xf32>
    %cst_16 = arith.constant dense<0.000000e+00> : vector<2x8xf32>
    %26 = vector.multi_reduction <add>, %23, %cst_16 [1] : vector<2x8x8xf32> to vector<2x8xf32>
    %27 = vector.shape_cast %26 : vector<2x8xf32> to vector<2x1x8xf32>
    %28 = math.rsqrt %25 : vector<2x8x1xf32>
    %29 = vector.broadcast %28 : vector<2x8x1xf32> to vector<2x8x8xf32>
    %30 = arith.mulf %29, %23 : vector<2x8x8xf32>
    %31 = math.rsqrt %27 : vector<2x1x8xf32>
    %32 = vector.broadcast %31 : vector<2x1x8xf32> to vector<2x8x8xf32>
    %33 = arith.mulf %30, %32 : vector<2x8x8xf32>
    %34 = vector.shape_cast %33 : vector<2x8x8xf32> to vector<16x8xf32>
    %cst_17 = arith.constant dense<0.000000e+00> : vector<16x128xf32>
    %35 = tpu.matmul %34, %2, %cst_17 {dimension_numbers = #tpu.dot_dimension_numbers<[1], [0], [0], [1], [0, 0, 1, 1], [], []>} : vector<16x8xf32>, vector<8x128xf32>, vector<16x128xf32> -> vector<16x128xf32>
    %36 = vector.broadcast %8 : vector<1x128xf32> to vector<16x128xf32>
    %37 = arith.addf %35, %36 : vector<16x128xf32>
    %cst_18 = arith.constant 0.000000e+00 : f32
    %38 = vector.broadcast %cst_18 : f32 to vector<16x128xf32>
    %39 = arith.maximumf %37, %38 : vector<16x128xf32>
    %40 = vector.shape_cast %39 : vector<16x128xf32> to vector<2x8x128xf32>
    "tpu.trace_start"() <{level = 10 : i32, message = "sij,sjk->sik"}> : () -> ()
    %cst_19 = arith.constant dense<0.000000e+00> : vector<2x8x128xf32>
    %41 = tpu.matmul %33, %40, %cst_19 {dimension_numbers = #tpu.dot_dimension_numbers<[2], [1], [1], [2], [0, 0, 0, 1, 1, 2], [0], [0]>} : vector<2x8x8xf32>, vector<2x8x128xf32>, vector<2x8x128xf32> -> vector<2x8x128xf32>
    "tpu.trace_stop"() : () -> ()
    %42 = vector.shape_cast %41 : vector<2x8x128xf32> to vector<16x128xf32>
    %cst_20 = arith.constant dense<0.000000e+00> : vector<16x128xf32>
    %43 = tpu.matmul %42, %3, %cst_20 {dimension_numbers = #tpu.dot_dimension_numbers<[1], [0], [0], [1], [0, 0, 1, 1], [], []>} : vector<16x128xf32>, vector<128x128xf32>, vector<16x128xf32> -> vector<16x128xf32>
    %44 = vector.broadcast %9 : vector<1x128xf32> to vector<16x128xf32>
    %45 = arith.addf %43, %44 : vector<16x128xf32>
    %cst_21 = arith.constant 0.000000e+00 : f32
    %46 = vector.broadcast %cst_21 : f32 to vector<16x128xf32>
    %47 = arith.maximumf %45, %46 : vector<16x128xf32>
    %48 = vector.shape_cast %47 : vector<16x128xf32> to vector<2x8x128xf32>
    "tpu.trace_start"() <{level = 10 : i32, message = "sij,sjk->sik"}> : () -> ()
    %cst_22 = arith.constant dense<0.000000e+00> : vector<2x8x128xf32>
    %49 = tpu.matmul %33, %48, %cst_22 {dimension_numbers = #tpu.dot_dimension_numbers<[2], [1], [1], [2], [0, 0, 0, 1, 1, 2], [0], [0]>} : vector<2x8x8xf32>, vector<2x8x128xf32>, vector<2x8x128xf32> -> vector<2x8x128xf32>
    "tpu.trace_stop"() : () -> ()
    %50 = vector.shape_cast %49 : vector<2x8x128xf32> to vector<16x128xf32>
    %cst_23 = arith.constant dense<0.000000e+00> : vector<16x128xf32>
    %51 = tpu.matmul %50, %4, %cst_23 {dimension_numbers = #tpu.dot_dimension_numbers<[1], [0], [0], [1], [0, 0, 1, 1], [], []>} : vector<16x128xf32>, vector<128x128xf32>, vector<16x128xf32> -> vector<16x128xf32>
    %52 = vector.broadcast %10 : vector<1x128xf32> to vector<16x128xf32>
    %53 = arith.addf %51, %52 : vector<16x128xf32>
    %cst_24 = arith.constant dense<0.000000e+00> : vector<16x128xf32>
    %54 = tpu.matmul %37, %5, %cst_24 {dimension_numbers = #tpu.dot_dimension_numbers<[1], [0], [0], [1], [0, 0, 1, 1], [], []>} : vector<16x128xf32>, vector<128x128xf32>, vector<16x128xf32> -> vector<16x128xf32>
    %cst_25 = arith.constant dense<0.000000e+00> : vector<16x128xf32>
    %55 = tpu.matmul %45, %6, %cst_25 {dimension_numbers = #tpu.dot_dimension_numbers<[1], [0], [0], [1], [0, 0, 1, 1], [], []>} : vector<16x128xf32>, vector<128x128xf32>, vector<16x128xf32> -> vector<16x128xf32>
    %56 = arith.addf %54, %55 : vector<16x128xf32>
    %cst_26 = arith.constant dense<0.000000e+00> : vector<16x128xf32>
    %57 = tpu.matmul %53, %7, %cst_26 {dimension_numbers = #tpu.dot_dimension_numbers<[1], [0], [0], [1], [0, 0, 1, 1], [], []>} : vector<16x128xf32>, vector<128x128xf32>, vector<16x128xf32> -> vector<16x128xf32>
    %58 = arith.addf %56, %57 : vector<16x128xf32>
    %59 = vector.broadcast %11 : vector<1x128xf32> to vector<16x128xf32>
    %60 = arith.addf %58, %59 : vector<16x128xf32>
    %61 = vector.shape_cast %60 : vector<16x128xf32> to vector<2x8x128xf32>
    %c0_27 = arith.constant 0 : index
    %c0_28 = arith.constant 0 : index
    %c0_29 = arith.constant 0 : index
    %62 = vector.load %arg3[%c0_27, %c0_28, %c0_29] : memref<2x8x128xf32, #tpu.memory_space<vmem>>, vector<2x8x128xf32>
    tpu.vector_store %arg3[%c0_27, %c0_28, %c0_29], %61 {strides = array<i32>} : memref<2x8x128xf32, #tpu.memory_space<vmem>>, vector<2x8x128xf32>,
    return
  }
  func.func @transform_0(%arg0: i32) -> (i32, i32, i32) {
    %c0_i32 = arith.constant 0 : i32
    %c0_i32_0 = arith.constant 0 : i32
    %c0_i32_1 = arith.constant 0 : i32
    return %arg0, %c0_i32, %c0_i32_0 : i32, i32, i32
  }
  func.func @transform_1(%arg0: i32) -> (i32, i32) {
    %c0_i32 = arith.constant 0 : i32
    %c0_i32_0 = arith.constant 0 : i32
    %c0_i32_1 = arith.constant 0 : i32
    return %c0_i32, %c0_i32_0 : i32, i32
  }
  func.func @transform_2(%arg0: i32) -> (i32, i32, i32) {
    %c0_i32 = arith.constant 0 : i32
    %c0_i32_0 = arith.constant 0 : i32
    %c0_i32_1 = arith.constant 0 : i32
    return %arg0, %c0_i32, %c0_i32_0 : i32, i32, i32
  }
}

</mosaic_0001>

<llo_original>
// kernel: fwd.1
$region0: #{fwd.1}
  #allocation0 [shape = 'u32[]', space=smem, size = 0x4, offset = 0x4, fixed_abs, tag = 'smem constant byte address 0x4 - core index']
  #allocation1 [shape = 'u32[144,128]{1,0:T(1,128)}', space=vmem, size = 0x12000, scoped, tag = 'internal scratch']
  %s0 = inlined_call_operand.vmem [shape: f32[4,8,8], index: 0, kind: input, shape index: {}]
  %s1 = inlined_call_operand.hbm [shape: f32[672,128], index: 1, kind: input, shape index: {}]
  %s2 = inlined_call_operand.vmem [shape: f32[4,8,128], index: 2, kind: output, shape index: {}]
  %s3 = sld [smem:[#allocation0]]
  $region45: #{fwd.1} parent=0
    _
  %s5 = ssub.s32 1, %s3
  %s6 = scalar_select 0, %s5, %s3
  $region1: #{fwd.1} parent=0
    #allocation2 [shape = 'u8[344064]{0}', space=vmem, size = 0x54000, scoped, tag = 'input window, operand 1, single buffered']
    #allocation3 [shape = 's32[2]{0}', space=sflag, size = 0x8, scoped, tag = 'scoped memory for fwd.1']
    %7 = vsyncpa [#allocation3], 0
    loop: start=0, step=1, limit=4
    $region2: #{fwd.1} parent=1 // loop_pre_header
      _
    $region3: #{fwd.1} parent=1 // loop_header
      %s9 = sphi 0, %s13
      %p10 = scmp.ge.s32.totalorder %s9, 4
      %s19 = sphi 0, %s21
      %s22 = sphi 0, %s19
      %s23 = sphi 0, %s22
      %s39 = sphi 0, %s23
      %s43 = sphi 0, %s43
      %s45 = sphi 0, %s43
      %s46 = sphi 0, %s45
      %s60 = sphi 0, %s46
      %s66 = sphi 0, %s68
      %s69 = sphi 0, %s66
      %s70 = sphi 0, %s69
      %s86 = sphi 0, %s70
    $region4: #{fwd.1} parent=1 // loop_header_branch
      %12 = sbr.rel (%p10) target = $region8
    $region5: #{fwd.1} parent=1 // loop_body
      %s14 = ssub.s32 %s9, 1
      %s15 = ssub.s32 %s9, 2
      %s16 = sadd.s32 %s9, 1
      %s17 = ssub.s32 %s9, %s16
      %p18 = scmp.eq.s32.totalorder %s17, 0
      %s20 = sadd.s32 %s19, 1
      %s21 = scalar_select %p18, %s19, %s20
      %p24 = pneg %p18
      %p25 = scmp.eq.s32.totalorder %s9, 1
      %p26 = por %p24, %p25
      %p27 = scmp.ne.s32.totalorder %s19, %s22
      %p28 = scmp.eq.s32.totalorder %s9, 0
      %p29 = por %p27, %p28
      %p30 = scmp.ne.s32.totalorder %s19, %s22
      %p31 = scmp.eq.s32.totalorder %s14, 1
      %p32 = por %p30, %p31
      %p33 = scmp.ne.s32.totalorder %s22, %s23
      %p34 = scmp.eq.s32.totalorder %s14, 0
      %p35 = por %p33, %p34
      %p36 = scmp.ne.s32.totalorder %s22, %s23
      %p37 = scmp.eq.s32.totalorder %s15, 1
      %p38 = por %p36, %p37
      %p40 = scmp.ne.s32.totalorder %s23, %s39
      %p41 = scmp.eq.s32.totalorder %s15, 0
      %p42 = por %p40, %p41
      %s44 = sadd.s32 %s43, 1
      %p47 = scmp.eq.s32.totalorder %s9, 1
      %p48 = scmp.ne.s32.totalorder %s43, %s45
      %p49 = scmp.eq.s32.totalorder %s9, 0
      %p50 = por %p48, %p49
      %p51 = scmp.ne.s32.totalorder %s43, %s45
      %p52 = scmp.eq.s32.totalorder %s14, 1
      %p53 = por %p51, %p52
      %p54 = scmp.ne.s32.totalorder %s45, %s46
      %p55 = scmp.eq.s32.totalorder %s14, 0
      %p56 = por %p54, %p55
      %p57 = scmp.ne.s32.totalorder %s45, %s46
      %p58 = scmp.eq.s32.totalorder %s15, 1
      %p59 = por %p57, %p58
      %p61 = scmp.ne.s32.totalorder %s46, %s60
      %p62 = scmp.eq.s32.totalorder %s15, 0
      %p63 = por %p61, %p62
      %s64 = ssub.s32 %s9, %s16
      %p65 = scmp.eq.s32.totalorder %s64, 0
      %s67 = sadd.s32 %s66, 1
      %s68 = scalar_select %p65, %s66, %s67
      %p71 = pneg %p65
      %p72 = scmp.eq.s32.totalorder %s9, 1
      %p73 = por %p71, %p72
      %p74 = scmp.ne.s32.totalorder %s66, %s69
      %p75 = scmp.eq.s32.totalorder %s9, 0
      %p76 = por %p74, %p75
      %p77 = scmp.ne.s32.totalorder %s66, %s69
      %p78 = scmp.eq.s32.totalorder %s14, 1
      %p79 = por %p77, %p78
      %p80 = scmp.ne.s32.totalorder %s69, %s70
      %p81 = scmp.eq.s32.totalorder %s14, 0
      %p82 = por %p80, %p81
      %p83 = scmp.ne.s32.totalorder %s69, %s70
      %p84 = scmp.eq.s32.totalorder %s15, 1
      %p85 = por %p83, %p84
      %p87 = scmp.ne.s32.totalorder %s70, %s86
      %p88 = scmp.eq.s32.totalorder %s15, 0
      %p89 = por %p87, %p88
      %p90 = scmp.le.s32.totalorder 1, %s9
      %p91 = scmp.lt.s32.totalorder %s9, 3
      %p92 = pnand %p90, %p91
      %p93 = pneg %p92
      // Predicated region
      $region9: #{fwd.1} parent=5 // pred_check
        _
      $region10: #{fwd.1} parent=5 // pred_check_branch
        %95 = sbr.rel (%p92) target = $region12
      $region11: #{fwd.1} parent=5 // pred_region
        %s96 = ssub.s32 %s9, 1
        // Predicated region
        $region13: #{fwd.1} parent=11 // pred_check
          %p97 = pneg %p56
        $region14: #{fwd.1} parent=11 // pred_check_branch
          %99 = sbr.rel (%p97) target = $region16
        $region15: #{fwd.1} parent=11 // pred_region
          %s101 = ssub.s32 10752, 10752
          %102 = vsyncadd [#allocation3], %s101
          %s103 = sshll.u32 [#allocation2], 4
          %s104 = int_to_ptr.vmem [resolvable:$true] %s103
          %109 = dma.hbm_to_vmem [thread:$0]  %s1, 10752, %s104, [#allocation3], 128, 128, 8
        $region16: #{fwd.1} parent=11 // pred_fallthru
          _
      $region12: #{fwd.1} parent=5 // pred_fallthru
        _
      %p110 = scmp.lt.s32.totalorder %s9, 2
      // Predicated region
      $region17: #{fwd.1} parent=5 // pred_check
        %p111 = pneg %p110
      $region18: #{fwd.1} parent=5 // pred_check_branch
        %113 = sbr.rel (%p111) target = $region20
      $region19: #{fwd.1} parent=5 // pred_region
        // Predicated region
        $region21: #{fwd.1} parent=19 // pred_check
          %p114 = pneg %p29
        $region22: #{fwd.1} parent=19 // pred_check_branch
          %116 = sbr.rel (%p114) target = $region24
        $region23: #{fwd.1} parent=19 // pred_region
          %s117 = smul.u32 2, %s9
          %p118 = scmp.lt.s32.totalorder %s117, 3
          %s119 = scalar_select %p118, %s117, 3
          %s120 = smul.addr %s119, 8
          %s121 = scalar_lea.vmem %s0, %s120
          %s122 = smul.u32 2, %s9
        $region24: #{fwd.1} parent=19 // pred_fallthru
          _
      $region20: #{fwd.1} parent=5 // pred_fallthru
        _
      %p123 = scmp.le.s32.totalorder 1, %s9
      %p124 = scmp.lt.s32.totalorder %s9, 3
      %p125 = pnand %p123, %p124
      %p126 = pneg %p125
      // Predicated region
      $region25: #{fwd.1} parent=5 // pred_check
        _
      $region26: #{fwd.1} parent=5 // pred_check_branch
        %128 = sbr.rel (%p125) target = $region28
      $region27: #{fwd.1} parent=5 // pred_region
        %s129 = ssub.s32 %s9, 1
        // Predicated region
        $region29: #{fwd.1} parent=27 // pred_check
          %p130 = pneg %p56
        $region30: #{fwd.1} parent=27 // pred_check_branch
          %132 = sbr.rel (%p130) target = $region32
        $region31: #{fwd.1} parent=27 // pred_region
          %133 = dma.done [#allocation3], 10752
        $region32: #{fwd.1} parent=27 // pred_fallthru
          _
        %s134 = smul.u32 2, %s14
        %p135 = scmp.lt.s32.totalorder %s134, 3
        %s136 = scalar_select %p135, %s134, 3
        %s137 = smul.addr %s136, 8
        %s138 = scalar_lea.vmem %s0, %s137
        %p139 = pneg %p35
        %p140 = pneg %p32
        %p141 = pneg %p56
        %p142 = pneg %p53
        %p143 = pneg %p82
        %p144 = pneg %p79
        %s145 = smul.u32 2, %s14
        %p146 = scmp.lt.s32.totalorder %s145, 3
        %s147 = scalar_select %p146, %s145, 3
        %s148 = smul.addr %s147, 8
        %s149 = scalar_lea.vmem %s2, %s148
        %s150 = smul.u32 2, %s14
        %p151 = scmp.lt.s32.totalorder %s150, 3
        %s152 = scalar_select %p151, %s150, 3
        %s153 = smul.addr %s152, 8
        %s154 = scalar_lea.vmem %s0, %s153
        %s155 = smul.u32 2, %s14
        %s156 = smul.u32 2, %s14
        %p157 = scmp.lt.s32.totalorder %s156, 3
        %s158 = scalar_select %p157, %s156, 3
        %s159 = smul.addr %s158, 8
        %s160 = scalar_lea.vmem %s2, %s159
        %s161 = smul.u32 2, %s14
        %v162 = vld [vmem:[#allocation2] sm:$0xff]
        %v163 = vld [vmem:[#allocation2 + $0x8] sm:$0xff]
        %v164 = vld [vmem:[#allocation2 + $0x10] sm:$0xff]
        %v165 = vld [vmem:[#allocation2 + $0x18] sm:$0xff]
        %v166 = vld [vmem:[#allocation2 + $0x20] sm:$0xff]
        %v167 = vld [vmem:[#allocation2 + $0x28] sm:$0xff]
        %v168 = vld [vmem:[#allocation2 + $0x30] sm:$0xff]
        %v169 = vld [vmem:[#allocation2 + $0x38] sm:$0xff]
        %v170 = vld [vmem:[#allocation2 + $0x40] sm:$0xff]
        %v171 = vld [vmem:[#allocation2 + $0x48] sm:$0xff]
        %v172 = vld [vmem:[#allocation2 + $0x50] sm:$0xff]
        %v173 = vld [vmem:[#allocation2 + $0x58] sm:$0xff]
        %v174 = vld [vmem:[#allocation2 + $0x60] sm:$0xff]
        %v175 = vld [vmem:[#allocation2 + $0x68] sm:$0xff]
        %v176 = vld [vmem:[#allocation2 + $0x70] sm:$0xff]
        %v177 = vld [vmem:[#allocation2 + $0x78] sm:$0xff]
        %v178 = vld [vmem:[#allocation2 + $0x80] sm:$0xff]
        %v179 = vld [vmem:[#allocation2 + $0x88] sm:$0xff]
        %v180 = vld [vmem:[#allocation2 + $0x90] sm:$0xff]
        %v181 = vld [vmem:[#allocation2 + $0x98] sm:$0xff]
        %v182 = vld [vmem:[#allocation2 + $0xa0] sm:$0xff]
        %v183 = vld [vmem:[#allocation2 + $0xa8] sm:$0xff]
        %v184 = vld [vmem:[#allocation2 + $0xb0] sm:$0xff]
        %v185 = vld [vmem:[#allocation2 + $0xb8] sm:$0xff]
        %v186 = vld [vmem:[#allocation2 + $0xc0] sm:$0xff]
        %v187 = vld [vmem:[#allocation2 + $0xc8] sm:$0xff]
        %v188 = vld [vmem:[#allocation2 + $0xd0] sm:$0xff]
        %v189 = vld [vmem:[#allocation2 + $0xd8] sm:$0xff]
        %v190 = vld [vmem:[#allocation2 + $0xe0] sm:$0xff]
        %v191 = vld [vmem:[#allocation2 + $0xe8] sm:$0xff]
        %v192 = vld [vmem:[#allocation2 + $0xf0] sm:$0xff]
        %v193 = vld [vmem:[#allocation2 + $0xf8] sm:$0xff]
        %v194 = vld [vmem:[#allocation2 + $0x100] sm:$0xff]
        %v195 = vld [vmem:[#allocation2 + $0x108] sm:$0xff]
        %v196 = vld [vmem:[#allocation2 + $0x110] sm:$0xff]
        %v197 = vld [vmem:[#allocation2 + $0x118] sm:$0xff]
        %v198 = vld [vmem:[#allocation2 + $0x120] sm:$0xff]
        %v199 = vld [vmem:[#allocation2 + $0x128] sm:$0xff]
        %v200 = vld [vmem:[#allocation2 + $0x130] sm:$0xff]
        %v201 = vld [vmem:[#allocation2 + $0x138] sm:$0xff]
        %v202 = vld [vmem:[#allocation2 + $0x140] sm:$0xff]
        %v203 = vld [vmem:[#allocation2 + $0x148] sm:$0xff]
        %v204 = vld [vmem:[#allocation2 + $0x150] sm:$0xff]
        %v205 = vld [vmem:[#allocation2 + $0x158] sm:$0xff]
        %v206 = vld [vmem:[#allocation2 + $0x160] sm:$0xff]
        %v207 = vld [vmem:[#allocation2 + $0x168] sm:$0xff]
        %v208 = vld [vmem:[#allocation2 + $0x170] sm:$0xff]
        %v209 = vld [vmem:[#allocation2 + $0x178] sm:$0xff]
        %v210 = vld [vmem:[#allocation2 + $0x180] sm:$0xff]
        %v211 = vld [vmem:[#allocation2 + $0x188] sm:$0xff]
        %v212 = vld [vmem:[#allocation2 + $0x190] sm:$0xff]
        %v213 = vld [vmem:[#allocation2 + $0x198] sm:$0xff]
        %v214 = vld [vmem:[#allocation2 + $0x1a0] sm:$0xff]
        %v215 = vld [vmem:[#allocation2 + $0x1a8] sm:$0xff]
        %v216 = vld [vmem:[#allocation2 + $0x1b0] sm:$0xff]
        %v217 = vld [vmem:[#allocation2 + $0x1b8] sm:$0xff]
        %v218 = vld [vmem:[#allocation2 + $0x1c0] sm:$0xff]
        %v219 = vld [vmem:[#allocation2 + $0x1c8] sm:$0xff]
        %v220 = vld [vmem:[#allocation2 + $0x1d0] sm:$0xff]
        %v221 = vld [vmem:[#allocation2 + $0x1d8] sm:$0xff]
        %v222 = vld [vmem:[#allocation2 + $0x1e0] sm:$0xff]
        %v223 = vld [vmem:[#allocation2 + $0x1e8] sm:$0xff]
        %v224 = vld [vmem:[#allocation2 + $0x1f0] sm:$0xff]
        %v225 = vld [vmem:[#allocation2 + $0x1f8] sm:$0xff]
        %v226 = vld [vmem:[#allocation2 + $0x200] sm:$0xff]
        %v227 = vld [vmem:[#allocation2 + $0x208] sm:$0xff]
        %v228 = vld [vmem:[#allocation2 + $0x210] sm:$0xff]
        %v229 = vld [vmem:[#allocation2 + $0x218] sm:$0xff]
        %v230 = vld [vmem:[#allocation2 + $0x220] sm:$0xff]
        %v231 = vld [vmem:[#allocation2 + $0x228] sm:$0xff]
        %v232 = vld [vmem:[#allocation2 + $0x230] sm:$0xff]
        %v233 = vld [vmem:[#allocation2 + $0x238] sm:$0xff]
        %v234 = vld [vmem:[#allocation2 + $0x240] sm:$0xff]
        %v235 = vld [vmem:[#allocation2 + $0x248] sm:$0xff]
        %v236 = vld [vmem:[#allocation2 + $0x250] sm:$0xff]
        %v237 = vld [vmem:[#allocation2 + $0x258] sm:$0xff]
        %v238 = vld [vmem:[#allocation2 + $0x260] sm:$0xff]
        %v239 = vld [vmem:[#allocation2 + $0x268] sm:$0xff]
        %v240 = vld [vmem:[#allocation2 + $0x270] sm:$0xff]
        %v241 = vld [vmem:[#allocation2 + $0x278] sm:$0xff]
        %v242 = vld [vmem:[#allocation2 + $0x280] sm:$0xff]
        %v243 = vld [vmem:[#allocation2 + $0x288] sm:$0xff]
        %v244 = vld [vmem:[#allocation2 + $0x290] sm:$0xff]
        %v245 = vld [vmem:[#allocation2 + $0x298] sm:$0x1]
        %v246 = vld [vmem:[#allocation2 + $0x299] sm:$0x1]
        %v247 = vld [vmem:[#allocation2 + $0x29a] sm:$0x1]
        %v248 = vld [vmem:[#allocation2 + $0x29b] sm:$0x1]
        %v249 = vld [vmem:[%s154] sm:$0xff]
        %v250 = vld [vmem:[%s154 + $0x8] sm:$0xff]
        %v251 = vxor.u32 %v249, 2147483648
        %v252 = vxor.u32 %v250, 2147483648
        %v253 = vmul.f32 %v251, 1.442695
        %v254 = vpow.pop %v253
        %v255 = vmul.f32 %v252, 1.442695
        %v256 = vpow.pop %v255
        %v257 = vadd.f32 %v254, 1.0
        %v258 = vadd.f32 %v256, 1.0
        %v259 = vrcp.pop %v257
        %v260 = vmul.f32 1.0, %v259
        %v261 = vrcp.pop %v258
        %v262 = vmul.f32 1.0, %v261
        %v263 = vmul.f32 %v260, %v162
        %v264 = vmul.f32 %v262, %v162
        %v265 = vadd.f32 %v163, %v263
        %v266 = vadd.f32 %v163, %v264
        %vm267 = vcmask 64512
        %v268 = vsel %vm267, %v265, 0.0
        %269 = vadd.xlane.f32.xlu0 %v268
        %v270 = vpop.xlane.xlu0 %269
        %v271 = vsel %vm267, %v266, 0.0
        %272 = vadd.xlane.f32.xlu0 %v271
        %v273 = vpop.xlane.xlu0 %272
        %v274 = vrot.slane %v268, 4
        %v275 = vadd.f32 %v268, %v274
        %v276 = vrot.slane %v275, 2
        %v277 = vadd.f32 %v275, %v276
        %v278 = vrot.slane %v277, 1
        %v279 = vadd.f32 %v277, %v278
        %v280 = vrot.slane %v271, 4
        %v281 = vadd.f32 %v271, %v280
        %v282 = vrot.slane %v281, 2
        %v283 = vadd.f32 %v281, %v282
        %v284 = vrot.slane %v283, 1
        %v285 = vadd.f32 %v283, %v284
        %v286 = vrsqrt.pop %v270
        %v287 = vrsqrt.pop %v273
        %v288 = vmul.f32 %v286, %v265
        %v289 = vmul.f32 %v287, %v266
        %v290 = vrsqrt.pop %v279
        %v291 = vrsqrt.pop %v285
        %v292 = vmul.f32 %v288, %v290
        %v293 = vmul.f32 %v289, %v291
        %v294 = vlaneseq
        %v295 = vshrl.u32 %v294, 7
        %v296 = vsub.s32 0, %v295
        %v297 = vrot.slane %v245, %v296
        %v299 = vsel %vm267, %v292, 0
        %v302 = vsel %vm267, %v293, 0
        %304 = vmatprep.subr.mxu0 0.0
        %305 = vmatpush1.msra.mxu0 0.0
        %306 = vmatprep.subr.mxu0 0.0
        %307 = vmatpush1.msra.mxu0 0.0
        %308 = vmatprep.subr.mxu0 0.0
        %309 = vmatpush1.msra.mxu0 0.0
        %310 = vmatprep.subr.mxu0 0.0
        %311 = vmatpush1.msra.mxu0 0.0
        %312 = vmatprep.subr.mxu0 0.0
        %313 = vmatpush1.msra.mxu0 0.0
        %314 = vmatprep.subr.mxu0 0.0
        %315 = vmatpush1.msra.mxu0 0.0
        %316 = vmatprep.subr.mxu0 0.0
        %317 = vmatpush1.msra.mxu0 0.0
        %318 = vmatprep.subr.mxu0 0.0
        %319 = vmatpush1.msra.mxu0 0.0
        %320 = vmatprep.subr.mxu0 0.0
        %321 = vmatpush1.msra.mxu0 0.0
        %322 = vmatprep.subr.mxu0 0.0
        %323 = vmatpush1.msra.mxu0 0.0
        %324 = vmatprep.subr.mxu0 0.0
        %325 = vmatpush1.msra.mxu0 0.0
        %326 = vmatprep.subr.mxu0 0.0
        %327 = vmatpush1.msra.mxu0 0.0
        %328 = vmatprep.subr.mxu0 0.0
        %329 = vmatpush1.msra.mxu0 0.0
        %330 = vmatprep.subr.mxu0 0.0
        %331 = vmatpush1.msra.mxu0 0.0
        %332 = vmatprep.subr.mxu0 0.0
        %333 = vmatpush1.msra.mxu0 0.0
        %334 = vmatprep.subr.mxu0 0.0
        %335 = vmatpush1.msra.mxu0 %v164
        %336 = vmatprep.subr.mxu0 0.0
        %337 = vmatpush2.msra.mxu0 0.0
        %338 = vmatprep.subr.mxu0 0.0
        %339 = vmatpush2.msra.mxu0 0.0
        %340 = vmatprep.subr.mxu0 0.0
        %341 = vmatpush2.msra.mxu0 0.0
        %342 = vmatprep.subr.mxu0 0.0
        %343 = vmatpush2.msra.mxu0 0.0
        %344 = vmatprep.subr.mxu0 0.0
        %345 = vmatpush2.msra.mxu0 0.0
        %346 = vmatprep.subr.mxu0 0.0
        %347 = vmatpush2.msra.mxu0 0.0
        %348 = vmatprep.subr.mxu0 0.0
        %349 = vmatpush2.msra.mxu0 0.0
        %350 = vmatprep.subr.mxu0 0.0
        %351 = vmatpush2.msra.mxu0 0.0
        %352 = vmatprep.subr.mxu0 0.0
        %353 = vmatpush2.msra.mxu0 0.0
        %354 = vmatprep.subr.mxu0 0.0
        %355 = vmatpush2.msra.mxu0 0.0
        %356 = vmatprep.subr.mxu0 0.0
        %357 = vmatpush2.msra.mxu0 0.0
        %358 = vmatprep.subr.mxu0 0.0
        %359 = vmatpush2.msra.mxu0 0.0
        %360 = vmatprep.subr.mxu0 0.0
        %361 = vmatpush2.msra.mxu0 0.0
        %362 = vmatprep.subr.mxu0 0.0
        %363 = vmatpush2.msra.mxu0 0.0
        %364 = vmatprep.subr.mxu0 0.0
        %365 = vmatpush2.msra.mxu0 0.0
        %366 = vmatprep.subr.mxu0 0.0
        %367 = vmatpush2.msra.mxu0 0.0
        %368 = vmatprep.mubr.f32.mxu0 0.0
        %369 = vmatmul.mubr.f32.gmra.mxu0 %v299
        %v370 = vpop.f32.mrf.mxu0
        %v371 = vadd.f32 %v297, %v370
        %v372 = vpop.f32.mrf.mxu0
        %373 = vmatprep.mubr.f32.mxu0 0.0
        %374 = vmatmul.mubr.f32.gmra.mxu0 %v302
        %v375 = vpop.f32.mrf.mxu0
        %v376 = vadd.f32 %v297, %v375
        %v377 = vpop.f32.mrf.mxu0
        %378 = vdwg.mxu0
        %v379 = vmax.f32 %v371, 0.0
        %v380 = vmax.f32 %v376, 0.0
        %381 = vmatprep.subr.mxu0 0.0
        %382 = vmatpush1.msra.mxu0 0.0
        %383 = vmatprep.subr.mxu0 0.0
        %384 = vmatpush1.msra.mxu0 0.0
        %385 = vmatprep.subr.mxu0 0.0
        %386 = vmatpush1.msra.mxu0 0.0
        %387 = vmatprep.subr.mxu0 0.0
        %388 = vmatpush1.msra.mxu0 0.0
        %389 = vmatprep.subr.mxu0 0.0
        %390 = vmatpush1.msra.mxu0 0.0
        %391 = vmatprep.subr.mxu0 0.0
        %392 = vmatpush1.msra.mxu0 0.0
        %393 = vmatprep.subr.mxu0 0.0
        %394 = vmatpush1.msra.mxu0 0.0
        %395 = vmatprep.subr.mxu0 0.0
        %396 = vmatpush1.msra.mxu0 0.0
        %397 = vmatprep.subr.mxu0 0.0
        %398 = vmatpush1.msra.mxu0 0.0
        %399 = vmatprep.subr.mxu0 0.0
        %400 = vmatpush1.msra.mxu0 0.0
        %401 = vmatprep.subr.mxu0 0.0
        %402 = vmatpush1.msra.mxu0 0.0
        %403 = vmatprep.subr.mxu0 0.0
        %404 = vmatpush1.msra.mxu0 0.0
        %405 = vmatprep.subr.mxu0 0.0
        %406 = vmatpush1.msra.mxu0 0.0
        %407 = vmatprep.subr.mxu0 0.0
        %408 = vmatpush1.msra.mxu0 0.0
        %409 = vmatprep.subr.mxu0 0.0
        %410 = vmatpush1.msra.mxu0 0.0
        %411 = vmatprep.subr.mxu0 0.0
        %412 = vmatpush1.msra.mxu0 %v379
        %413 = vmatprep.subr.mxu0 0.0
        %414 = vmatpush2.msra.mxu0 0.0
        %415 = vmatprep.subr.mxu0 0.0
        %416 = vmatpush2.msra.mxu0 0.0
        %417 = vmatprep.subr.mxu0 0.0
        %418 = vmatpush2.msra.mxu0 0.0
        %419 = vmatprep.subr.mxu0 0.0
        %420 = vmatpush2.msra.mxu0 0.0
        %421 = vmatprep.subr.mxu0 0.0
        %422 = vmatpush2.msra.mxu0 0.0
        %423 = vmatprep.subr.mxu0 0.0
        %424 = vmatpush2.msra.mxu0 0.0
        %425 = vmatprep.subr.mxu0 0.0
        %426 = vmatpush2.msra.mxu0 0.0
        %427 = vmatprep.subr.mxu0 0.0
        %428 = vmatpush2.msra.mxu0 0.0
        %429 = vmatprep.subr.mxu0 0.0
        %430 = vmatpush2.msra.mxu0 0.0
        %431 = vmatprep.subr.mxu0 0.0
        %432 = vmatpush2.msra.mxu0 0.0
        %433 = vmatprep.subr.mxu0 0.0
        %434 = vmatpush2.msra.mxu0 0.0
        %435 = vmatprep.subr.mxu0 0.0
        %436 = vmatpush2.msra.mxu0 0.0
        %437 = vmatprep.subr.mxu0 0.0
        %438 = vmatpush2.msra.mxu0 0.0
        %439 = vmatprep.subr.mxu0 0.0
        %440 = vmatpush2.msra.mxu0 0.0
        %441 = vmatprep.subr.mxu0 0.0
        %442 = vmatpush2.msra.mxu0 0.0
        %443 = vmatprep.subr.mxu0 0.0
        %444 = vmatpush2.msra.mxu0 0.0
        %445 = vmatprep.mubr.f32.mxu0 0.0
        %446 = vmatmul.mubr.f32.gmra.mxu0 %v299
        %v447 = vpop.f32.mrf.mxu0
        %v448 = vadd.f32 0.0, %v447
        %v449 = vpop.f32.mrf.mxu0
        %450 = vdwg.mxu0
        %451 = vmatprep.subr.mxu0 0.0
        %452 = vmatpush1.msra.mxu0 0.0
        %453 = vmatprep.subr.mxu0 0.0
        %454 = vmatpush1.msra.mxu0 0.0
        %455 = vmatprep.subr.mxu0 0.0
        %456 = vmatpush1.msra.mxu0 0.0
        %457 = vmatprep.subr.mxu0 0.0
        %458 = vmatpush1.msra.mxu0 0.0
        %459 = vmatprep.subr.mxu0 0.0
        %460 = vmatpush1.msra.mxu0 0.0
        %461 = vmatprep.subr.mxu0 0.0
        %462 = vmatpush1.msra.mxu0 0.0
        %463 = vmatprep.subr.mxu0 0.0
        %464 = vmatpush1.msra.mxu0 0.0
        %465 = vmatprep.subr.mxu0 0.0
        %466 = vmatpush1.msra.mxu0 0.0
        %467 = vmatprep.subr.mxu0 0.0
        %468 = vmatpush1.msra.mxu0 0.0
        %469 = vmatprep.subr.mxu0 0.0
        %470 = vmatpush1.msra.mxu0 0.0
        %471 = vmatprep.subr.mxu0 0.0
        %472 = vmatpush1.msra.mxu0 0.0
        %473 = vmatprep.subr.mxu0 0.0
        %474 = vmatpush1.msra.mxu0 0.0
        %475 = vmatprep.subr.mxu0 0.0
        %476 = vmatpush1.msra.mxu0 0.0
        %477 = vmatprep.subr.mxu0 0.0
        %478 = vmatpush1.msra.mxu0 0.0
        %479 = vmatprep.subr.mxu0 0.0
        %480 = vmatpush1.msra.mxu0 0.0
        %481 = vmatprep.subr.mxu0 0.0
        %482 = vmatpush1.msra.mxu0 %v380
        %483 = vmatprep.subr.mxu0 0.0
        %484 = vmatpush2.msra.mxu0 0.0
        %485 = vmatprep.subr.mxu0 0.0
        %486 = vmatpush2.msra.mxu0 0.0
        %487 = vmatprep.subr.mxu0 0.0
        %488 = vmatpush2.msra.mxu0 0.0
        %489 = vmatprep.subr.mxu0 0.0
        %490 = vmatpush2.msra.mxu0 0.0
        %491 = vmatprep.subr.mxu0 0.0
        %492 = vmatpush2.msra.mxu0 0.0
        %493 = vmatprep.subr.mxu0 0.0
        %494 = vmatpush2.msra.mxu0 0.0
        %495 = vmatprep.subr.mxu0 0.0
        %496 = vmatpush2.msra.mxu0 0.0
        %497 = vmatprep.subr.mxu0 0.0
        %498 = vmatpush2.msra.mxu0 0.0
        %499 = vmatprep.subr.mxu0 0.0
        %500 = vmatpush2.msra.mxu0 0.0
        %501 = vmatprep.subr.mxu0 0.0
        %502 = vmatpush2.msra.mxu0 0.0
        %503 = vmatprep.subr.mxu0 0.0
        %504 = vmatpush2.msra.mxu0 0.0
        %505 = vmatprep.subr.mxu0 0.0
        %506 = vmatpush2.msra.mxu0 0.0
        %507 = vmatprep.subr.mxu0 0.0
        %508 = vmatpush2.msra.mxu0 0.0
        %509 = vmatprep.subr.mxu0 0.0
        %510 = vmatpush2.msra.mxu0 0.0
        %511 = vmatprep.subr.mxu0 0.0
        %512 = vmatpush2.msra.mxu0 0.0
        %513 = vmatprep.subr.mxu0 0.0
        %514 = vmatpush2.msra.mxu0 0.0
        %515 = vmatprep.mubr.f32.mxu0 0.0
        %516 = vmatmul.mubr.f32.gmra.mxu0 %v302
        %v517 = vpop.f32.mrf.mxu0
        %v518 = vadd.f32 0.0, %v517
        %v519 = vpop.f32.mrf.mxu0
        %520 = vdwg.mxu0
        %v521 = vlaneseq
        %v522 = vshrl.u32 %v521, 7
        %v523 = vsub.s32 0, %v522
        %v524 = vrot.slane %v246, %v523
        %525 = vmatprep.subr.mxu0 0.0
        %526 = vmatpush1.msra.mxu0 %v180
        %527 = vmatprep.subr.mxu0 0.0
        %528 = vmatpush1.msra.mxu0 %v179
        %529 = vmatprep.subr.mxu0 0.0
        %530 = vmatpush1.msra.mxu0 %v178
        %531 = vmatprep.subr.mxu0 0.0
        %532 = vmatpush1.msra.mxu0 %v177
        %533 = vmatprep.subr.mxu0 0.0
        %534 = vmatpush1.msra.mxu0 %v176
        %535 = vmatprep.subr.mxu0 0.0
        %536 = vmatpush1.msra.mxu0 %v175
        %537 = vmatprep.subr.mxu0 0.0
        %538 = vmatpush1.msra.mxu0 %v174
        %539 = vmatprep.subr.mxu0 0.0
        %540 = vmatpush1.msra.mxu0 %v173
        %541 = vmatprep.subr.mxu0 0.0
        %542 = vmatpush1.msra.mxu0 %v172
        %543 = vmatprep.subr.mxu0 0.0
        %544 = vmatpush1.msra.mxu0 %v171
        %545 = vmatprep.subr.mxu0 0.0
        %546 = vmatpush1.msra.mxu0 %v170
        %547 = vmatprep.subr.mxu0 0.0
        %548 = vmatpush1.msra.mxu0 %v169
        %549 = vmatprep.subr.mxu0 0.0
        %550 = vmatpush1.msra.mxu0 %v168
        %551 = vmatprep.subr.mxu0 0.0
        %552 = vmatpush1.msra.mxu0 %v167
        %553 = vmatprep.subr.mxu0 0.0
        %554 = vmatpush1.msra.mxu0 %v166
        %555 = vmatprep.subr.mxu0 0.0
        %556 = vmatpush1.msra.mxu0 %v165
        %557 = vmatprep.subr.mxu0 0.0
        %558 = vmatpush2.msra.mxu0 0.0
        %559 = vmatprep.subr.mxu0 0.0
        %560 = vmatpush2.msra.mxu0 0.0
        %561 = vmatprep.subr.mxu0 0.0
        %562 = vmatpush2.msra.mxu0 0.0
        %563 = vmatprep.subr.mxu0 0.0
        %564 = vmatpush2.msra.mxu0 0.0
        %565 = vmatprep.subr.mxu0 0.0
        %566 = vmatpush2.msra.mxu0 0.0
        %567 = vmatprep.subr.mxu0 0.0
        %568 = vmatpush2.msra.mxu0 0.0
        %569 = vmatprep.subr.mxu0 0.0
        %570 = vmatpush2.msra.mxu0 0.0
        %571 = vmatprep.subr.mxu0 0.0
        %572 = vmatpush2.msra.mxu0 0.0
        %573 = vmatprep.subr.mxu0 0.0
        %574 = vmatpush2.msra.mxu0 0.0
        %575 = vmatprep.subr.mxu0 0.0
        %576 = vmatpush2.msra.mxu0 0.0
        %577 = vmatprep.subr.mxu0 0.0
        %578 = vmatpush2.msra.mxu0 0.0
        %579 = vmatprep.subr.mxu0 0.0
        %580 = vmatpush2.msra.mxu0 0.0
        %581 = vmatprep.subr.mxu0 0.0
        %582 = vmatpush2.msra.mxu0 0.0
        %583 = vmatprep.subr.mxu0 0.0
        %584 = vmatpush2.msra.mxu0 0.0
        %585 = vmatprep.subr.mxu0 0.0
        %586 = vmatpush2.msra.mxu0 0.0
        %587 = vmatprep.subr.mxu0 0.0
        %588 = vmatpush2.msra.mxu0 0.0
        %589 = vmatprep.mubr.f32.mxu0 0.0
        %590 = vmatmul.mubr.f32.gmra.mxu0 %v448
        %v591 = vpop.f32.mrf.mxu0
        %v592 = vadd.f32 %v524, %v591
        %v593 = vpop.f32.mrf.mxu0
        %594 = vmatprep.mubr.f32.mxu0 0.0
        %595 = vmatmul.mubr.f32.gmra.mxu0 %v518
        %v596 = vpop.f32.mrf.mxu0
        %v597 = vadd.f32 %v524, %v596
        %v598 = vpop.f32.mrf.mxu0
        %599 = vdwg.mxu0
        %v600 = vmax.f32 %v592, 0.0
        %v601 = vmax.f32 %v597, 0.0
        %602 = vmatprep.subr.mxu0 0.0
        %603 = vmatpush1.msra.mxu0 0.0
        %604 = vmatprep.subr.mxu0 0.0
        %605 = vmatpush1.msra.mxu0 0.0
        %606 = vmatprep.subr.mxu0 0.0
        %607 = vmatpush1.msra.mxu0 0.0
        %608 = vmatprep.subr.mxu0 0.0
        %609 = vmatpush1.msra.mxu0 0.0
        %610 = vmatprep.subr.mxu0 0.0
        %611 = vmatpush1.msra.mxu0 0.0
        %612 = vmatprep.subr.mxu0 0.0
        %613 = vmatpush1.msra.mxu0 0.0
        %614 = vmatprep.subr.mxu0 0.0
        %615 = vmatpush1.msra.mxu0 0.0
        %616 = vmatprep.subr.mxu0 0.0
        %617 = vmatpush1.msra.mxu0 0.0
        %618 = vmatprep.subr.mxu0 0.0
        %619 = vmatpush1.msra.mxu0 0.0
        %620 = vmatprep.subr.mxu0 0.0
        %621 = vmatpush1.msra.mxu0 0.0
        %622 = vmatprep.subr.mxu0 0.0
        %623 = vmatpush1.msra.mxu0 0.0
        %624 = vmatprep.subr.mxu0 0.0
        %625 = vmatpush1.msra.mxu0 0.0
        %626 = vmatprep.subr.mxu0 0.0
        %627 = vmatpush1.msra.mxu0 0.0
        %628 = vmatprep.subr.mxu0 0.0
        %629 = vmatpush1.msra.mxu0 0.0
        %630 = vmatprep.subr.mxu0 0.0
        %631 = vmatpush1.msra.mxu0 0.0
        %632 = vmatprep.subr.mxu0 0.0
        %633 = vmatpush1.msra.mxu0 %v600
        %634 = vmatprep.subr.mxu0 0.0
        %635 = vmatpush2.msra.mxu0 0.0
        %636 = vmatprep.subr.mxu0 0.0
        %637 = vmatpush2.msra.mxu0 0.0
        %638 = vmatprep.subr.mxu0 0.0
        %639 = vmatpush2.msra.mxu0 0.0
        %640 = vmatprep.subr.mxu0 0.0
        %641 = vmatpush2.msra.mxu0 0.0
        %642 = vmatprep.subr.mxu0 0.0
        %643 = vmatpush2.msra.mxu0 0.0
        %644 = vmatprep.subr.mxu0 0.0
        %645 = vmatpush2.msra.mxu0 0.0
        %646 = vmatprep.subr.mxu0 0.0
        %647 = vmatpush2.msra.mxu0 0.0
        %648 = vmatprep.subr.mxu0 0.0
        %649 = vmatpush2.msra.mxu0 0.0
        %650 = vmatprep.subr.mxu0 0.0
        %651 = vmatpush2.msra.mxu0 0.0
        %652 = vmatprep.subr.mxu0 0.0
        %653 = vmatpush2.msra.mxu0 0.0
        %654 = vmatprep.subr.mxu0 0.0
        %655 = vmatpush2.msra.mxu0 0.0
        %656 = vmatprep.subr.mxu0 0.0
        %657 = vmatpush2.msra.mxu0 0.0
        %658 = vmatprep.subr.mxu0 0.0
        %659 = vmatpush2.msra.mxu0 0.0
        %660 = vmatprep.subr.mxu0 0.0
        %661 = vmatpush2.msra.mxu0 0.0
        %662 = vmatprep.subr.mxu0 0.0
        %663 = vmatpush2.msra.mxu0 0.0
        %664 = vmatprep.subr.mxu0 0.0
        %665 = vmatpush2.msra.mxu0 0.0
        %666 = vmatprep.mubr.f32.mxu0 0.0
        %667 = vmatmul.mubr.f32.gmra.mxu0 %v299
        %v668 = vpop.f32.mrf.mxu0
        %v669 = vadd.f32 0.0, %v668
        %v670 = vpop.f32.mrf.mxu0
        %671 = vdwg.mxu0
        %672 = vmatprep.subr.mxu0 0.0
        %673 = vmatpush1.msra.mxu0 0.0
        %674 = vmatprep.subr.mxu0 0.0
        %675 = vmatpush1.msra.mxu0 0.0
        %676 = vmatprep.subr.mxu0 0.0
        %677 = vmatpush1.msra.mxu0 0.0
        %678 = vmatprep.subr.mxu0 0.0
        %679 = vmatpush1.msra.mxu0 0.0
        %680 = vmatprep.subr.mxu0 0.0
        %681 = vmatpush1.msra.mxu0 0.0
        %682 = vmatprep.subr.mxu0 0.0
        %683 = vmatpush1.msra.mxu0 0.0
        %684 = vmatprep.subr.mxu0 0.0
        %685 = vmatpush1.msra.mxu0 0.0
        %686 = vmatprep.subr.mxu0 0.0
        %687 = vmatpush1.msra.mxu0 0.0
        %688 = vmatprep.subr.mxu0 0.0
        %689 = vmatpush1.msra.mxu0 0.0
        %690 = vmatprep.subr.mxu0 0.0
        %691 = vmatpush1.msra.mxu0 0.0
        %692 = vmatprep.subr.mxu0 0.0
        %693 = vmatpush1.msra.mxu0 0.0
        %694 = vmatprep.subr.mxu0 0.0
        %695 = vmatpush1.msra.mxu0 0.0
        %696 = vmatprep.subr.mxu0 0.0
        %697 = vmatpush1.msra.mxu0 0.0
        %698 = vmatprep.subr.mxu0 0.0
        %699 = vmatpush1.msra.mxu0 0.0
        %700 = vmatprep.subr.mxu0 0.0
        %701 = vmatpush1.msra.mxu0 0.0
        %702 = vmatprep.subr.mxu0 0.0
        %703 = vmatpush1.msra.mxu0 %v601
        %704 = vmatprep.subr.mxu0 0.0
        %705 = vmatpush2.msra.mxu0 0.0
        %706 = vmatprep.subr.mxu0 0.0
        %707 = vmatpush2.msra.mxu0 0.0
        %708 = vmatprep.subr.mxu0 0.0
        %709 = vmatpush2.msra.mxu0 0.0
        %710 = vmatprep.subr.mxu0 0.0
        %711 = vmatpush2.msra.mxu0 0.0
        %712 = vmatprep.subr.mxu0 0.0
        %713 = vmatpush2.msra.mxu0 0.0
        %714 = vmatprep.subr.mxu0 0.0
        %715 = vmatpush2.msra.mxu0 0.0
        %716 = vmatprep.subr.mxu0 0.0
        %717 = vmatpush2.msra.mxu0 0.0
        %718 = vmatprep.subr.mxu0 0.0
        %719 = vmatpush2.msra.mxu0 0.0
        %720 = vmatprep.subr.mxu0 0.0
        %721 = vmatpush2.msra.mxu0 0.0
        %722 = vmatprep.subr.mxu0 0.0
        %723 = vmatpush2.msra.mxu0 0.0
        %724 = vmatprep.subr.mxu0 0.0
        %725 = vmatpush2.msra.mxu0 0.0
        %726 = vmatprep.subr.mxu0 0.0
        %727 = vmatpush2.msra.mxu0 0.0
        %728 = vmatprep.subr.mxu0 0.0
        %729 = vmatpush2.msra.mxu0 0.0
        %730 = vmatprep.subr.mxu0 0.0
        %731 = vmatpush2.msra.mxu0 0.0
        %732 = vmatprep.subr.mxu0 0.0
        %733 = vmatpush2.msra.mxu0 0.0
        %734 = vmatprep.subr.mxu0 0.0
        %735 = vmatpush2.msra.mxu0 0.0
        %736 = vmatprep.mubr.f32.mxu0 0.0
        %737 = vmatmul.mubr.f32.gmra.mxu0 %v302
        %v738 = vpop.f32.mrf.mxu0
        %v739 = vadd.f32 0.0, %v738
        %v740 = vpop.f32.mrf.mxu0
        %741 = vdwg.mxu0
        %v742 = vlaneseq
        %v743 = vshrl.u32 %v742, 7
        %v744 = vsub.s32 0, %v743
        %v745 = vrot.slane %v247, %v744
        %746 = vmatprep.subr.mxu0 0.0
        %747 = vmatpush1.msra.mxu0 %v196
        %748 = vmatprep.subr.mxu0 0.0
        %749 = vmatpush1.msra.mxu0 %v195
        %750 = vmatprep.subr.mxu0 0.0
        %751 = vmatpush1.msra.mxu0 %v194
        %752 = vmatprep.subr.mxu0 0.0
        %753 = vmatpush1.msra.mxu0 %v193
        %754 = vmatprep.subr.mxu0 0.0
        %755 = vmatpush1.msra.mxu0 %v192
        %756 = vmatprep.subr.mxu0 0.0
        %757 = vmatpush1.msra.mxu0 %v191
        %758 = vmatprep.subr.mxu0 0.0
        %759 = vmatpush1.msra.mxu0 %v190
        %760 = vmatprep.subr.mxu0 0.0
        %761 = vmatpush1.msra.mxu0 %v189
        %762 = vmatprep.subr.mxu0 0.0
        %763 = vmatpush1.msra.mxu0 %v188
        %764 = vmatprep.subr.mxu0 0.0
        %765 = vmatpush1.msra.mxu0 %v187
        %766 = vmatprep.subr.mxu0 0.0
        %767 = vmatpush1.msra.mxu0 %v186
        %768 = vmatprep.subr.mxu0 0.0
        %769 = vmatpush1.msra.mxu0 %v185
        %770 = vmatprep.subr.mxu0 0.0
        %771 = vmatpush1.msra.mxu0 %v184
        %772 = vmatprep.subr.mxu0 0.0
        %773 = vmatpush1.msra.mxu0 %v183
        %774 = vmatprep.subr.mxu0 0.0
        %775 = vmatpush1.msra.mxu0 %v182
        %776 = vmatprep.subr.mxu0 0.0
        %777 = vmatpush1.msra.mxu0 %v181
        %778 = vmatprep.subr.mxu0 0.0
        %779 = vmatpush2.msra.mxu0 0.0
        %780 = vmatprep.subr.mxu0 0.0
        %781 = vmatpush2.msra.mxu0 0.0
        %782 = vmatprep.subr.mxu0 0.0
        %783 = vmatpush2.msra.mxu0 0.0
        %784 = vmatprep.subr.mxu0 0.0
        %785 = vmatpush2.msra.mxu0 0.0
        %786 = vmatprep.subr.mxu0 0.0
        %787 = vmatpush2.msra.mxu0 0.0
        %788 = vmatprep.subr.mxu0 0.0
        %789 = vmatpush2.msra.mxu0 0.0
        %790 = vmatprep.subr.mxu0 0.0
        %791 = vmatpush2.msra.mxu0 0.0
        %792 = vmatprep.subr.mxu0 0.0
        %793 = vmatpush2.msra.mxu0 0.0
        %794 = vmatprep.subr.mxu0 0.0
        %795 = vmatpush2.msra.mxu0 0.0
        %796 = vmatprep.subr.mxu0 0.0
        %797 = vmatpush2.msra.mxu0 0.0
        %798 = vmatprep.subr.mxu0 0.0
        %799 = vmatpush2.msra.mxu0 0.0
        %800 = vmatprep.subr.mxu0 0.0
        %801 = vmatpush2.msra.mxu0 0.0
        %802 = vmatprep.subr.mxu0 0.0
        %803 = vmatpush2.msra.mxu0 0.0
        %804 = vmatprep.subr.mxu0 0.0
        %805 = vmatpush2.msra.mxu0 0.0
        %806 = vmatprep.subr.mxu0 0.0
        %807 = vmatpush2.msra.mxu0 0.0
        %808 = vmatprep.subr.mxu0 0.0
        %809 = vmatpush2.msra.mxu0 0.0
        %810 = vmatprep.mubr.f32.mxu0 0.0
        %811 = vmatmul.mubr.f32.gmra.mxu0 %v669
        %v812 = vpop.f32.mrf.mxu0
        %v813 = vadd.f32 %v745, %v812
        %v814 = vpop.f32.mrf.mxu0
        %815 = vmatprep.mubr.f32.mxu0 0.0
        %816 = vmatmul.mubr.f32.gmra.mxu0 %v739
        %v817 = vpop.f32.mrf.mxu0
        %v818 = vadd.f32 %v745, %v817
        %v819 = vpop.f32.mrf.mxu0
        %820 = vdwg.mxu0
        %821 = vmatprep.subr.mxu0 0.0
        %822 = vmatpush1.msra.mxu0 %v228
        %823 = vmatprep.subr.mxu0 0.0
        %824 = vmatpush1.msra.mxu0 %v227
        %825 = vmatprep.subr.mxu0 0.0
        %826 = vmatpush1.msra.mxu0 %v226
        %827 = vmatprep.subr.mxu0 0.0
        %828 = vmatpush1.msra.mxu0 %v225
        %829 = vmatprep.subr.mxu0 0.0
        %830 = vmatpush1.msra.mxu0 %v224
        %831 = vmatprep.subr.mxu0 0.0
        %832 = vmatpush1.msra.mxu0 %v223
        %833 = vmatprep.subr.mxu0 0.0
        %834 = vmatpush1.msra.mxu0 %v222
        %835 = vmatprep.subr.mxu0 0.0
        %836 = vmatpush1.msra.mxu0 %v221
        %837 = vmatprep.subr.mxu0 0.0
        %838 = vmatpush1.msra.mxu0 %v220
        %839 = vmatprep.subr.mxu0 0.0
        %840 = vmatpush1.msra.mxu0 %v219
        %841 = vmatprep.subr.mxu0 0.0
        %842 = vmatpush1.msra.mxu0 %v218
        %843 = vmatprep.subr.mxu0 0.0
        %844 = vmatpush1.msra.mxu0 %v217
        %845 = vmatprep.subr.mxu0 0.0
        %846 = vmatpush1.msra.mxu0 %v216
        %847 = vmatprep.subr.mxu0 0.0
        %848 = vmatpush1.msra.mxu0 %v215
        %849 = vmatprep.subr.mxu0 0.0
        %850 = vmatpush1.msra.mxu0 %v214
        %851 = vmatprep.subr.mxu0 0.0
        %852 = vmatpush1.msra.mxu0 %v213
        %853 = vmatprep.subr.mxu0 0.0
        %854 = vmatpush2.msra.mxu0 0.0
        %855 = vmatprep.subr.mxu0 0.0
        %856 = vmatpush2.msra.mxu0 0.0
        %857 = vmatprep.subr.mxu0 0.0
        %858 = vmatpush2.msra.mxu0 0.0
        %859 = vmatprep.subr.mxu0 0.0
        %860 = vmatpush2.msra.mxu0 0.0
        %861 = vmatprep.subr.mxu0 0.0
        %862 = vmatpush2.msra.mxu0 0.0
        %863 = vmatprep.subr.mxu0 0.0
        %864 = vmatpush2.msra.mxu0 0.0
        %865 = vmatprep.subr.mxu0 0.0
        %866 = vmatpush2.msra.mxu0 0.0
        %867 = vmatprep.subr.mxu0 0.0
        %868 = vmatpush2.msra.mxu0 0.0
        %869 = vmatprep.subr.mxu0 0.0
        %870 = vmatpush2.msra.mxu0 0.0
        %871 = vmatprep.subr.mxu0 0.0
        %872 = vmatpush2.msra.mxu0 0.0
        %873 = vmatprep.subr.mxu0 0.0
        %874 = vmatpush2.msra.mxu0 0.0
        %875 = vmatprep.subr.mxu0 0.0
        %876 = vmatpush2.msra.mxu0 0.0
        %877 = vmatprep.subr.mxu0 0.0
        %878 = vmatpush2.msra.mxu0 0.0
        %879 = vmatprep.subr.mxu0 0.0
        %880 = vmatpush2.msra.mxu0 0.0
        %881 = vmatprep.subr.mxu0 0.0
        %882 = vmatpush2.msra.mxu0 0.0
        %883 = vmatprep.subr.mxu0 0.0
        %884 = vmatpush2.msra.mxu0 0.0
        %885 = vmatprep.mubr.f32.mxu0 0.0
        %886 = vmatmul.mubr.f32.gmra.mxu0 %v592
        %v887 = vpop.f32.mrf.mxu0
        %v888 = vadd.f32 0.0, %v887
        %v889 = vpop.f32.mrf.mxu0
        %890 = vmatprep.mubr.f32.mxu0 0.0
        %891 = vmatmul.mubr.f32.gmra.mxu0 %v597
        %v892 = vpop.f32.mrf.mxu0
        %v893 = vadd.f32 0.0, %v892
        %v894 = vpop.f32.mrf.mxu0
        %895 = vdwg.mxu0
        %896 = vmatprep.subr.mxu0 0.0
        %897 = vmatpush1.msra.mxu0 %v212
        %898 = vmatprep.subr.mxu0 0.0
        %899 = vmatpush1.msra.mxu0 %v211
        %900 = vmatprep.subr.mxu0 0.0
        %901 = vmatpush1.msra.mxu0 %v210
        %902 = vmatprep.subr.mxu0 0.0
        %903 = vmatpush1.msra.mxu0 %v209
        %904 = vmatprep.subr.mxu0 0.0
        %905 = vmatpush1.msra.mxu0 %v208
        %906 = vmatprep.subr.mxu0 0.0
        %907 = vmatpush1.msra.mxu0 %v207
        %908 = vmatprep.subr.mxu0 0.0
        %909 = vmatpush1.msra.mxu0 %v206
        %910 = vmatprep.subr.mxu0 0.0
        %911 = vmatpush1.msra.mxu0 %v205
        %912 = vmatprep.subr.mxu0 0.0
        %913 = vmatpush1.msra.mxu0 %v204
        %914 = vmatprep.subr.mxu0 0.0
        %915 = vmatpush1.msra.mxu0 %v203
        %916 = vmatprep.subr.mxu0 0.0
        %917 = vmatpush1.msra.mxu0 %v202
        %918 = vmatprep.subr.mxu0 0.0
        %919 = vmatpush1.msra.mxu0 %v201
        %920 = vmatprep.subr.mxu0 0.0
        %921 = vmatpush1.msra.mxu0 %v200
        %922 = vmatprep.subr.mxu0 0.0
        %923 = vmatpush1.msra.mxu0 %v199
        %924 = vmatprep.subr.mxu0 0.0
        %925 = vmatpush1.msra.mxu0 %v198
        %926 = vmatprep.subr.mxu0 0.0
        %927 = vmatpush1.msra.mxu0 %v197
        %928 = vmatprep.subr.mxu0 0.0
        %929 = vmatpush2.msra.mxu0 0.0
        %930 = vmatprep.subr.mxu0 0.0
        %931 = vmatpush2.msra.mxu0 0.0
        %932 = vmatprep.subr.mxu0 0.0
        %933 = vmatpush2.msra.mxu0 0.0
        %934 = vmatprep.subr.mxu0 0.0
        %935 = vmatpush2.msra.mxu0 0.0
        %936 = vmatprep.subr.mxu0 0.0
        %937 = vmatpush2.msra.mxu0 0.0
        %938 = vmatprep.subr.mxu0 0.0
        %939 = vmatpush2.msra.mxu0 0.0
        %940 = vmatprep.subr.mxu0 0.0
        %941 = vmatpush2.msra.mxu0 0.0
        %942 = vmatprep.subr.mxu0 0.0
        %943 = vmatpush2.msra.mxu0 0.0
        %944 = vmatprep.subr.mxu0 0.0
        %945 = vmatpush2.msra.mxu0 0.0
        %946 = vmatprep.subr.mxu0 0.0
        %947 = vmatpush2.msra.mxu0 0.0
        %948 = vmatprep.subr.mxu0 0.0
        %949 = vmatpush2.msra.mxu0 0.0
        %950 = vmatprep.subr.mxu0 0.0
        %951 = vmatpush2.msra.mxu0 0.0
        %952 = vmatprep.subr.mxu0 0.0
        %953 = vmatpush2.msra.mxu0 0.0
        %954 = vmatprep.subr.mxu0 0.0
        %955 = vmatpush2.msra.mxu0 0.0
        %956 = vmatprep.subr.mxu0 0.0
        %957 = vmatpush2.msra.mxu0 0.0
        %958 = vmatprep.subr.mxu0 0.0
        %959 = vmatpush2.msra.mxu0 0.0
        %960 = vmatprep.mubr.f32.mxu0 0.0
        %961 = vmatmul.mubr.f32.gmra.mxu0 %v371
        %v962 = vpop.f32.mrf.mxu0
        %v963 = vadd.f32 %v888, %v962
        %v964 = vpop.f32.mrf.mxu0
        %965 = vmatprep.mubr.f32.mxu0 0.0
        %966 = vmatmul.mubr.f32.gmra.mxu0 %v376
        %v967 = vpop.f32.mrf.mxu0
        %v968 = vadd.f32 %v893, %v967
        %v969 = vpop.f32.mrf.mxu0
        %970 = vdwg.mxu0
        %971 = vmatprep.subr.mxu0 0.0
        %972 = vmatpush1.msra.mxu0 %v244
        %973 = vmatprep.subr.mxu0 0.0
        %974 = vmatpush1.msra.mxu0 %v243
        %975 = vmatprep.subr.mxu0 0.0
        %976 = vmatpush1.msra.mxu0 %v242
        %977 = vmatprep.subr.mxu0 0.0
        %978 = vmatpush1.msra.mxu0 %v241
        %979 = vmatprep.subr.mxu0 0.0
        %980 = vmatpush1.msra.mxu0 %v240
        %981 = vmatprep.subr.mxu0 0.0
        %982 = vmatpush1.msra.mxu0 %v239
        %983 = vmatprep.subr.mxu0 0.0
        %984 = vmatpush1.msra.mxu0 %v238
        %985 = vmatprep.subr.mxu0 0.0
        %986 = vmatpush1.msra.mxu0 %v237
        %987 = vmatprep.subr.mxu0 0.0
        %988 = vmatpush1.msra.mxu0 %v236
        %989 = vmatprep.subr.mxu0 0.0
        %990 = vmatpush1.msra.mxu0 %v235
        %991 = vmatprep.subr.mxu0 0.0
        %992 = vmatpush1.msra.mxu0 %v234
        %993 = vmatprep.subr.mxu0 0.0
        %994 = vmatpush1.msra.mxu0 %v233
        %995 = vmatprep.subr.mxu0 0.0
        %996 = vmatpush1.msra.mxu0 %v232
        %997 = vmatprep.subr.mxu0 0.0
        %998 = vmatpush1.msra.mxu0 %v231
        %999 = vmatprep.subr.mxu0 0.0
        %1000 = vmatpush1.msra.mxu0 %v230
        %1001 = vmatprep.subr.mxu0 0.0
        %1002 = vmatpush1.msra.mxu0 %v229
        %1003 = vmatprep.subr.mxu0 0.0
        %1004 = vmatpush2.msra.mxu0 0.0
        %1005 = vmatprep.subr.mxu0 0.0
        %1006 = vmatpush2.msra.mxu0 0.0
        %1007 = vmatprep.subr.mxu0 0.0
        %1008 = vmatpush2.msra.mxu0 0.0
        %1009 = vmatprep.subr.mxu0 0.0
        %1010 = vmatpush2.msra.mxu0 0.0
        %1011 = vmatprep.subr.mxu0 0.0
        %1012 = vmatpush2.msra.mxu0 0.0
        %1013 = vmatprep.subr.mxu0 0.0
        %1014 = vmatpush2.msra.mxu0 0.0
        %1015 = vmatprep.subr.mxu0 0.0
        %1016 = vmatpush2.msra.mxu0 0.0
        %1017 = vmatprep.subr.mxu0 0.0
        %1018 = vmatpush2.msra.mxu0 0.0
        %1019 = vmatprep.subr.mxu0 0.0
        %1020 = vmatpush2.msra.mxu0 0.0
        %1021 = vmatprep.subr.mxu0 0.0
        %1022 = vmatpush2.msra.mxu0 0.0
        %1023 = vmatprep.subr.mxu0 0.0
        %1024 = vmatpush2.msra.mxu0 0.0
        %1025 = vmatprep.subr.mxu0 0.0
        %1026 = vmatpush2.msra.mxu0 0.0
        %1027 = vmatprep.subr.mxu0 0.0
        %1028 = vmatpush2.msra.mxu0 0.0
        %1029 = vmatprep.subr.mxu0 0.0
        %1030 = vmatpush2.msra.mxu0 0.0
        %1031 = vmatprep.subr.mxu0 0.0
        %1032 = vmatpush2.msra.mxu0 0.0
        %1033 = vmatprep.subr.mxu0 0.0
        %1034 = vmatpush2.msra.mxu0 0.0
        %1035 = vmatprep.mubr.f32.mxu0 0.0
        %1036 = vmatmul.mubr.f32.gmra.mxu0 %v813
        %v1037 = vpop.f32.mrf.mxu0
        %v1038 = vadd.f32 0.0, %v1037
        %v1039 = vpop.f32.mrf.mxu0
        %1040 = vmatprep.mubr.f32.mxu0 0.0
        %1041 = vmatmul.mubr.f32.gmra.mxu0 %v818
        %v1042 = vpop.f32.mrf.mxu0
        %v1043 = vadd.f32 0.0, %v1042
        %v1044 = vpop.f32.mrf.mxu0
        %1045 = vdwg.mxu0
        %v1046 = vadd.f32 %v963, %v1038
        %v1047 = vadd.f32 %v968, %v1043
        %v1048 = vlaneseq
        %v1049 = vshrl.u32 %v1048, 7
        %v1050 = vsub.s32 0, %v1049
        %v1051 = vrot.slane %v248, %v1050
        %v1052 = vadd.f32 %v1046, %v1051
        %v1053 = vadd.f32 %v1047, %v1051
        %1054 = vst [vmem:[%s160] sm:$0xff] %v1052
        %1055 = vst [vmem:[%s160 + $0x8] sm:$0xff] %v1053
        %s1056 = smul.u32 2, %s14
        %p1057 = scmp.lt.s32.totalorder %s1056, 3
        %s1058 = scalar_select %p1057, %s1056, 3
        %s1059 = smul.addr %s1058, 8
        %s1060 = scalar_lea.vmem %s2, %s1059
        // Predicated region
        $region33: #{fwd.1} parent=27 // pred_check
          %p1061 = pneg %p79
        $region34: #{fwd.1} parent=27 // pred_check_branch
          %1063 = sbr.rel (%p1061) target = $region36
        $region35: #{fwd.1} parent=27 // pred_region
          %s1064 = smul.u32 2, %s14
        $region36: #{fwd.1} parent=27 // pred_fallthru
          _
      $region28: #{fwd.1} parent=5 // pred_fallthru
        _
      %p1065 = scmp.le.s32.totalorder 2, %s9
      // Predicated region
      $region37: #{fwd.1} parent=5 // pred_check
        %p1066 = pneg %p1065
      $region38: #{fwd.1} parent=5 // pred_check_branch
        %1068 = sbr.rel (%p1066) target = $region40
      $region39: #{fwd.1} parent=5 // pred_region
        %s1069 = ssub.s32 %s9, 2
        // Predicated region
        $region41: #{fwd.1} parent=39 // pred_check
          %p1070 = pneg %p85
        $region42: #{fwd.1} parent=39 // pred_check_branch
          %1072 = sbr.rel (%p1070) target = $region44
        $region43: #{fwd.1} parent=39 // pred_region
          %s1073 = smul.u32 2, %s15
          %p1074 = scmp.lt.s32.totalorder %s1073, 3
          %s1075 = scalar_select %p1074, %s1073, 3
          %s1076 = smul.addr %s1075, 8
          %s1077 = scalar_lea.vmem %s2, %s1076
        $region44: #{fwd.1} parent=39 // pred_fallthru
          _
      $region40: #{fwd.1} parent=5 // pred_fallthru
        _
    $region6: #{fwd.1} parent=1 // loop_footer
      %s13 = sadd.s32 1, %s9
    $region7: #{fwd.1} parent=1 // loop_footer_branch
      %8 = sbr.rel target = $region3
    $region8: #{fwd.1} parent=1 // loop_exit
      _
    %1078 = vsyncpa [#allocation3], 1
    %s1079 = scalar_lea.sflag [#allocation3], 1
    %1080 = vsyncpa %s1079, 1

</llo_original>
